<compile_context>
chip_gen: v7x
topology: tpu7x:2x2x1
jax: 0.10.0
libtpu: 0.0.40
codegen_flags: <defaults>
</compile_context>

<pallas_src>
import jax
import jax.numpy as jnp
import numpy as np
from jax.experimental import pallas as pl
from jax.experimental.pallas import tpu as pltpu


# Explicit scoped-VMEM budget: comfortably inside v7x's 64 MiB physical VMEM and far
# below v5e/v6e's 128 MiB; our streamed tiles only need a few MiB of it.
_VMEM_LIMIT_BYTES = 48 * 1024 * 1024


def _round_up(x, m):
    return ((x + m - 1) // m) * m


def _gin_layer(A, h, w1, b1, w2, b2, *, apply_relu, tm, tk):
    """One GINConv(eps=0) layer: nn((A + I) @ h), streaming bf16 A in (tm, tk) tiles."""
    n_pad = A.shape[0]
    d_in = h.shape[1]
    d_out = w2.shape[1]
    grid = (n_pad // tm, n_pad // tk)

    def kernel(a_ref, h_ref, w1_ref, b1_ref, w2_ref, b2_ref, out_ref, acc_ref):
        k = pl.program_id(1)

        @pl.when(k == 0)
        def _init():
            acc_ref[...] = jnp.zeros_like(acc_ref)

        # bf16 x bf16 -> f32 accumulation on the native MXU path.
        acc_ref[...] += jnp.dot(a_ref[...], h_ref[...],
                                preferred_element_type=jnp.float32)

        @pl.when(k == pl.num_programs(1) - 1)
        def _finish():
            agg = acc_ref[...]
            h1 = jnp.dot(agg, w1_ref[...], preferred_element_type=jnp.float32) + b1_ref[...]
            h1 = jnp.maximum(h1, 0.0)                 # ReLU inside the Sequential
            h2 = jnp.dot(h1, w2_ref[...], preferred_element_type=jnp.float32) + b2_ref[...]
            if apply_relu:                            # F.relu between conv layers
                h2 = jnp.maximum(h2, 0.0)
            out_ref[...] = h2.astype(out_ref.dtype)

    return pl.pallas_call(
        kernel,
        out_shape=jax.ShapeDtypeStruct((n_pad, d_out), jnp.bfloat16),
        grid_spec=pltpu.PrefetchScalarGridSpec(
            num_scalar_prefetch=0,
            grid=grid,
            in_specs=[
                pl.BlockSpec((tm, tk), lambda i, k: (i, k)),     # A tile (streamed, bf16)
                pl.BlockSpec((tk, d_in), lambda i, k: (k, 0)),   # h contraction slice (tiny)
                pl.BlockSpec((d_in, d_out), lambda i, k: (0, 0)),
                pl.BlockSpec((1, d_out), lambda i, k: (0, 0)),
                pl.BlockSpec((d_out, d_out), lambda i, k: (0, 0)),
                pl.BlockSpec((1, d_out), lambda i, k: (0, 0)),
            ],
            out_specs=pl.BlockSpec((tm, d_out), lambda i, k: (i, 0)),
            scratch_shapes=[pltpu.VMEM((tm, d_in), jnp.float32)],
        ),
        compiler_params=pltpu.CompilerParams(
            dimension_semantics=("parallel", "arbitrary"),   # rows shard across v7x's 2 TCs
            vmem_limit_bytes=_VMEM_LIMIT_BYTES,
        ),
    )(A, h, w1, b1, w2, b2)


def _readout_softmax(h_list, w_list, b_mlp, M):
    """logits = b + sum_l h_l @ w_l (no concat), then per-graph softmax over nodes."""
    n_pad = h_list[0].shape[0]
    L = len(h_list)

    def kernel(*refs):
        h_refs = refs[:L]
        w_refs = refs[L:2 * L]
        b_ref = refs[2 * L]            # scalar bias in SMEM
        m_ref = refs[2 * L + 1]
        out_ref = refs[2 * L + 2]

        logits = jnp.zeros((n_pad, 1), jnp.float32)
        for l in range(L):
            logits = logits + jnp.dot(h_refs[l][...].astype(jnp.float32), w_refs[l][...],
                                      preferred_element_type=jnp.float32)
        logits = logits + b_ref[0]

        Mm = m_ref[...]                                           # [N, G] one-hot membership
        row_valid = jnp.sum(Mm, axis=1, keepdims=True)            # 1 real node / 0 padding
        masked = jnp.where(Mm > 0.0, logits, -jnp.inf)            # [N, G]
        gmax = jnp.max(masked, axis=0, keepdims=True)             # [1, G]
        gmax = jnp.maximum(gmax, jnp.float32(-1e30))              # empty-graph guard: no 0*(-inf)
        node_max = jnp.einsum('ng,kg->nk', Mm, gmax,
                              preferred_element_type=jnp.float32)  # [N, 1]
        e = jnp.exp(logits - node_max) * row_valid                # padded rows -> exactly 0
        gsum = jnp.einsum('ng,nk->gk', Mm, e,
                          preferred_element_type=jnp.float32)      # [G, 1]
        node_sum = jnp.dot(Mm, gsum, preferred_element_type=jnp.float32)  # [N, 1]
        res = e / (node_sum + 1e-16)
        out_ref[...] = jnp.broadcast_to(res, out_ref.shape)        # lane-dense (128-wide) store

    in_specs = ([pl.BlockSpec(memory_space=pltpu.MemorySpace.VMEM)] * (2 * L)
                + [pl.BlockSpec(memory_space=pltpu.MemorySpace.SMEM)]
                + [pl.BlockSpec(memory_space=pltpu.MemorySpace.VMEM)])
    out = pl.pallas_call(
        kernel,
        out_shape=jax.ShapeDtypeStruct((n_pad, 128), jnp.float32),
        in_specs=in_specs,
        out_specs=pl.BlockSpec(memory_space=pltpu.MemorySpace.VMEM),
        compiler_params=pltpu.CompilerParams(vmem_limit_bytes=_VMEM_LIMIT_BYTES),
    )(*h_list, *w_list, b_mlp, M)
    return out[:, :1]


def explainer_gin_forward(x, edge_index, batch, params, num_layers, readout, num_graphs,
                          *, tile_m=256, tile_k=512, force_n_pad=None):
    N, F = x.shape
    dim = params['layers'][0][2].shape[1]     # w2 is [dim, dim]

    # --- padding & A tile sizes: (8,128)-aligned, contraction tile a multiple of 256 ---
    if force_n_pad is not None:
        n_pad, tm, tk = force_n_pad, tile_m, tile_k
    else:
        n8 = _round_up(N, 8)
        if n8 <= max(tile_m, tile_k):
            # Small graph: one full-array tile per layer call (A fully in VMEM, grid (1,1)).
            n_pad, tm, tk = n8, n8, n8
        else:
            align = int(np.lcm(tile_m, tile_k))
            n_pad, tm, tk = _round_up(N, align), tile_m, tile_k
    assert n_pad % tm == 0 and n_pad % tk == 0

    src, dst = edge_index[0], edge_index[1]

    # --- plain-JAX glue: densify graph structure (scatter) ---
    # GINConv(eps=0): nn((1+eps)*x + sum_j x_j) == nn((A + I) @ x), A[dst, src] = multiplicity.
    A = jnp.zeros((n_pad, n_pad), jnp.float32).at[dst, src].add(1.0)
    A = (A + jnp.eye(n_pad, dtype=jnp.float32)).astype(jnp.bfloat16)   # small ints: exact in bf16
    M = jnp.zeros((n_pad, num_graphs), jnp.float32).at[jnp.arange(N), batch].set(1.0)
    h = jnp.zeros((n_pad, F), jnp.bfloat16).at[:N].set(x.astype(jnp.bfloat16))

    # --- GIN conv stack: one streamed-A kernel per layer ---
    hs = []
    for li, (w1, b1, w2, b2) in enumerate(params['layers']):
        h = _gin_layer(A, h,
                       w1.astype(jnp.float32), b1.reshape(1, -1).astype(jnp.float32),
                       w2.astype(jnp.float32), b2.reshape(1, -1).astype(jnp.float32),
                       apply_relu=(li != num_layers - 1), tm=tm, tk=tk)
        hs.append(h)

    # --- readout + mlp + per-graph softmax (per-layer logit accumulation; no concat) ---
    w_mlp = params['mlp_w'].astype(jnp.float32)           # [ro_dim, 1]
    b_mlp = params['mlp_b'].reshape(1).astype(jnp.float32)
    if readout == 'concat':
        h_list = hs
        w_list = [w_mlp[l * dim:(l + 1) * dim, :] for l in range(num_layers)]
    elif readout == 'add':
        h_list = hs
        w_list = [w_mlp] * num_layers
    else:  # 'last'
        h_list = [hs[-1]]
        w_list = [w_mlp]

    out = _readout_softmax(h_list, w_list, b_mlp, M)
    return out[:N]


def reference_forward(x, edge_index, batch, params, num_layers, readout, num_graphs):
    # pure-JAX f32 reference of the PyTorch forward
    src, dst = edge_index[0], edge_index[1]
    h = x.astype(jnp.float32)
    xs = []
    for i, (w1, b1, w2, b2) in enumerate(params['layers']):
        agg = jnp.zeros_like(h).at[dst].add(h[src]) + h
        h1 = jax.nn.relu(agg @ w1 + b1)
        h = h1 @ w2 + b2
        if i != num_layers - 1:
            h = jax.nn.relu(h)
        xs.append(h)
    if readout == 'last':
        feat = xs[-1]
    elif readout == 'concat':
        feat = jnp.concatenate(xs, axis=1)
    else:
        feat = sum(xs)
    logits = (feat @ params['mlp_w'] + params['mlp_b'])[:, 0]
    gmax = jax.ops.segment_max(logits, batch, num_segments=num_graphs)
    e = jnp.exp(logits - gmax[batch])
    gsum = jax.ops.segment_sum(e, batch, num_segments=num_graphs)
    return (e / (gsum[batch] + 1e-16))[:, None]


if __name__ == "__main__":
    key = jax.random.PRNGKey(0)
    num_features = 4
    dim = 32
    num_gc_layers = 3
    N = 10
    num_graphs = 2

    keys = jax.random.split(key, 3 + 4 * num_gc_layers + 2)
    ki = iter(keys)

    x = jax.random.normal(next(ki), (N, num_features), jnp.float32)
    batch = jnp.array([0] * 5 + [1] * 5, dtype=jnp.int32)

    # bidirectional ring edges within each graph
    src_list, dst_list = [], []
    for nodes in (list(range(5)), list(range(5, 10))):
        for a in range(len(nodes)):
            b = (a + 1) % len(nodes)
            src_list += [nodes[a], nodes[b]]
            dst_list += [nodes[b], nodes[a]]
    edge_index = jnp.array([src_list, dst_list], dtype=jnp.int32)

    layers = []
    in_dim = num_features
    for i in range(num_gc_layers):
        w1 = 0.2 * jax.random.normal(next(ki), (in_dim, dim), jnp.float32)
        b1 = 0.1 * jax.random.normal(next(ki), (dim,), jnp.float32)
        w2 = 0.2 * jax.random.normal(next(ki), (dim, dim), jnp.float32)
        b2 = 0.1 * jax.random.normal(next(ki), (dim,), jnp.float32)
        layers.append((w1, b1, w2, b2))
        in_dim = dim
    mlp_w_full = 0.2 * jax.random.normal(next(ki), (dim * num_gc_layers, 1), jnp.float32)
    mlp_b = 0.1 * jax.random.normal(next(ki), (1,), jnp.float32)

    def params_for(readout):
        w = mlp_w_full if readout == 'concat' else mlp_w_full[:dim]
        return {'layers': layers, 'mlp_w': w, 'mlp_b': mlp_b}

    # bf16 adjacency / features vs the f32 reference -> loosened tolerance (per review).
    tests = [
        ('concat', {}),                                              # single-tile: A resident per layer
        ('concat', dict(force_n_pad=256, tile_m=64, tile_k=128)),    # forced streaming: grid (4, 2)
        ('add',    {}),
    ]
    for readout, kw in tests:
        params = params_for(readout)
        out = explainer_gin_forward(x, edge_index, batch, params,
                                    num_gc_layers, readout, num_graphs, **kw)
        out = np.asarray(jax.block_until_ready(out))
        ref = np.asarray(reference_forward(x, edge_index, batch, params,
                                           num_gc_layers, readout, num_graphs))
        err = float(np.abs(out - ref).max())
        assert out.shape == ref.shape and np.allclose(out, ref, atol=2e-2, rtol=2e-2), \
            f"mismatch readout={readout} kwargs={kw} max_err={err}"
    print("KERNEL_OK")
</pallas_src>

<mosaic_0001>
module attributes {stable_mosaic.version = 11 : i64} {
  func.func @kernel(%arg0: i32, %arg1: i32, %arg2: memref<16x16xbf16, #tpu.memory_space<vmem>>, %arg3: memref<16x4xbf16, #tpu.memory_space<vmem>>, %arg4: memref<4x32xf32, #tpu.memory_space<vmem>>, %arg5: memref<1x32xf32, #tpu.memory_space<vmem>>, %arg6: memref<32x32xf32, #tpu.memory_space<vmem>>, %arg7: memref<1x32xf32, #tpu.memory_space<vmem>>, %arg8: memref<16x32xbf16, #tpu.memory_space<vmem>>, %arg9: memref<16x4xf32, #tpu.memory_space<vmem>>) attributes {dimension_semantics = [#tpu.dimension_semantics<parallel>, #tpu.dimension_semantics<arbitrary>], iteration_bounds = array<i64: 1, 1>, scalar_prefetch = 0 : i64, scratch_operands = 1 : i64, tpu.core_type = #tpu.core_type<tc>, window_params = [{transform_indices = @transform_0, window_bounds = array<i64: 16, 16>}, {transform_indices = @transform_1, window_bounds = array<i64: 16, 4>}, {pipeline_mode = #tpu.pipeline_mode<synchronous>, transform_indices = @transform_2, window_bounds = array<i64: 4, 32>}, {pipeline_mode = #tpu.pipeline_mode<synchronous>, transform_indices = @transform_3, window_bounds = array<i64: 1, 32>}, {pipeline_mode = #tpu.pipeline_mode<synchronous>, transform_indices = @transform_4, window_bounds = array<i64: 32, 32>}, {pipeline_mode = #tpu.pipeline_mode<synchronous>, transform_indices = @transform_5, window_bounds = array<i64: 1, 32>}, {transform_indices = @transform_6, window_bounds = array<i64: 16, 32>}]} {
    %c0_i32 = arith.constant 0 : i32
    %0 = arith.cmpi eq, %arg1, %c0_i32 : i32
    %1 = arith.extui %0 : i1 to i32
    %c0_i32_0 = arith.constant 0 : i32
    %2 = arith.cmpi ne, %1, %c0_i32_0 : i32
    scf.if %2 {
      %cst_10 = arith.constant 0.000000e+00 : f32
      %12 = vector.broadcast %cst_10 : f32 to vector<16x4xf32>
      %c0_11 = arith.constant 0 : index
      %c0_12 = arith.constant 0 : index
      %13 = vector.load %arg9[%c0_11, %c0_12] : memref<16x4xf32, #tpu.memory_space<vmem>>, vector<16x4xf32>
      tpu.vector_store %arg9[%c0_11, %c0_12], %12 {strides = array<i32>} : memref<16x4xf32, #tpu.memory_space<vmem>>, vector<16x4xf32>,
    } else {
    }
    %c0 = arith.constant 0 : index
    %c0_1 = arith.constant 0 : index
    %3 = vector.load %arg9[%c0, %c0_1] : memref<16x4xf32, #tpu.memory_space<vmem>>, vector<16x4xf32>
    %c0_2 = arith.constant 0 : index
    %c0_3 = arith.constant 0 : index
    %4 = vector.load %arg2[%c0_2, %c0_3] : memref<16x16xbf16, #tpu.memory_space<vmem>>, vector<16x16xbf16>
    %c0_4 = arith.constant 0 : index
    %c0_5 = arith.constant 0 : index
    %5 = vector.load %arg3[%c0_4, %c0_5] : memref<16x4xbf16, #tpu.memory_space<vmem>>, vector<16x4xbf16>
    %cst = arith.constant dense<0.000000e+00> : vector<16x4xf32>
    %6 = tpu.matmul %4, %5, %cst {dimension_numbers = #tpu.dot_dimension_numbers<[1], [0], [0], [1], [0, 0, 1, 1], [], []>} : vector<16x16xbf16>, vector<16x4xbf16>, vector<16x4xf32> -> vector<16x4xf32>
    %7 = arith.addf %3, %6 : vector<16x4xf32>
    %c0_6 = arith.constant 0 : index
    %c0_7 = arith.constant 0 : index
    %8 = vector.load %arg9[%c0_6, %c0_7] : memref<16x4xf32, #tpu.memory_space<vmem>>, vector<16x4xf32>
    tpu.vector_store %arg9[%c0_6, %c0_7], %7 {strides = array<i32>} : memref<16x4xf32, #tpu.memory_space<vmem>>, vector<16x4xf32>,
    %c0_i32_8 = arith.constant 0 : i32
    %9 = arith.cmpi eq, %arg1, %c0_i32_8 : i32
    %10 = arith.extui %9 : i1 to i32
    %c0_i32_9 = arith.constant 0 : i32
    %11 = arith.cmpi ne, %10, %c0_i32_9 : i32
    scf.if %11 {
      %c0_10 = arith.constant 0 : index
      %c0_11 = arith.constant 0 : index
      %12 = vector.load %arg9[%c0_10, %c0_11] : memref<16x4xf32, #tpu.memory_space<vmem>>, vector<16x4xf32>
      %c0_12 = arith.constant 0 : index
      %c0_13 = arith.constant 0 : index
      %13 = vector.load %arg4[%c0_12, %c0_13] : memref<4x32xf32, #tpu.memory_space<vmem>>, vector<4x32xf32>
      %cst_14 = arith.constant dense<0.000000e+00> : vector<16x32xf32>
      %14 = tpu.matmul %12, %13, %cst_14 {dimension_numbers = #tpu.dot_dimension_numbers<[1], [0], [0], [1], [0, 0, 1, 1], [], []>} : vector<16x4xf32>, vector<4x32xf32>, vector<16x32xf32> -> vector<16x32xf32>
      %c0_15 = arith.constant 0 : index
      %c0_16 = arith.constant 0 : index
      %15 = vector.load %arg5[%c0_15, %c0_16] : memref<1x32xf32, #tpu.memory_space<vmem>>, vector<1x32xf32>
      %16 = vector.broadcast %15 : vector<1x32xf32> to vector<16x32xf32>
      %17 = arith.addf %14, %16 : vector<16x32xf32>
      %cst_17 = arith.constant 0.000000e+00 : f32
      %18 = vector.broadcast %cst_17 : f32 to vector<16x32xf32>
      %19 = arith.maximumf %17, %18 : vector<16x32xf32>
      %c0_18 = arith.constant 0 : index
      %c0_19 = arith.constant 0 : index
      %20 = vector.load %arg6[%c0_18, %c0_19] : memref<32x32xf32, #tpu.memory_space<vmem>>, vector<32x32xf32>
      %cst_20 = arith.constant dense<0.000000e+00> : vector<16x32xf32>
      %21 = tpu.matmul %19, %20, %cst_20 {dimension_numbers = #tpu.dot_dimension_numbers<[1], [0], [0], [1], [0, 0, 1, 1], [], []>} : vector<16x32xf32>, vector<32x32xf32>, vector<16x32xf32> -> vector<16x32xf32>
      %c0_21 = arith.constant 0 : index
      %c0_22 = arith.constant 0 : index
      %22 = vector.load %arg7[%c0_21, %c0_22] : memref<1x32xf32, #tpu.memory_space<vmem>>, vector<1x32xf32>
      %23 = vector.broadcast %22 : vector<1x32xf32> to vector<16x32xf32>
      %24 = arith.addf %21, %23 : vector<16x32xf32>
      %cst_23 = arith.constant 0.000000e+00 : f32
      %25 = vector.broadcast %cst_23 : f32 to vector<16x32xf32>
      %26 = arith.maximumf %24, %25 : vector<16x32xf32>
      %27 = arith.truncf %26 : vector<16x32xf32> to vector<16x32xbf16>
      %c0_24 = arith.constant 0 : index
      %c0_25 = arith.constant 0 : index
      %28 = vector.load %arg8[%c0_24, %c0_25] : memref<16x32xbf16, #tpu.memory_space<vmem>>, vector<16x32xbf16>
      tpu.vector_store %arg8[%c0_24, %c0_25], %27 {strides = array<i32>} : memref<16x32xbf16, #tpu.memory_space<vmem>>, vector<16x32xbf16>,
    } else {
    }
    return
  }
  func.func @transform_0(%arg0: i32, %arg1: i32) -> (i32, i32) {
    %c0_i32 = arith.constant 0 : i32
    return %arg0, %arg1 : i32, i32
  }
  func.func @transform_1(%arg0: i32, %arg1: i32) -> (i32, i32) {
    %c0_i32 = arith.constant 0 : i32
    %c0_i32_0 = arith.constant 0 : i32
    return %arg1, %c0_i32 : i32, i32
  }
  func.func @transform_2(%arg0: i32, %arg1: i32) -> (i32, i32) {
    %c0_i32 = arith.constant 0 : i32
    %c0_i32_0 = arith.constant 0 : i32
    %c0_i32_1 = arith.constant 0 : i32
    return %c0_i32, %c0_i32_0 : i32, i32
  }
  func.func @transform_3(%arg0: i32, %arg1: i32) -> (i32, i32) {
    %c0_i32 = arith.constant 0 : i32
    %c0_i32_0 = arith.constant 0 : i32
    %c0_i32_1 = arith.constant 0 : i32
    return %c0_i32, %c0_i32_0 : i32, i32
  }
  func.func @transform_4(%arg0: i32, %arg1: i32) -> (i32, i32) {
    %c0_i32 = arith.constant 0 : i32
    %c0_i32_0 = arith.constant 0 : i32
    %c0_i32_1 = arith.constant 0 : i32
    return %c0_i32, %c0_i32_0 : i32, i32
  }
  func.func @transform_5(%arg0: i32, %arg1: i32) -> (i32, i32) {
    %c0_i32 = arith.constant 0 : i32
    %c0_i32_0 = arith.constant 0 : i32
    %c0_i32_1 = arith.constant 0 : i32
    return %c0_i32, %c0_i32_0 : i32, i32
  }
  func.func @transform_6(%arg0: i32, %arg1: i32) -> (i32, i32) {
    %c0_i32 = arith.constant 0 : i32
    %c0_i32_0 = arith.constant 0 : i32
    return %arg0, %c0_i32 : i32, i32
  }
}

</mosaic_0001>

<llo_original>
// kernel: tpu_custom_call.1
$region0: #{tpu_custom_call.1}
  #allocation0 [shape = 'u32[]', space=smem, size = 0x4, offset = 0x4, fixed_abs, tag = 'smem constant byte address 0x4 - core index']
  #allocation1 [shape = 'u32[144,128]{1,0:T(1,128)}', space=vmem, size = 0x12000, scoped, tag = 'internal scratch']
  #allocation2 [shape = 'f32[16,4]{1,0:T(8,128)}', space=vmem, size = 0x2000, scoped, tag = 'scratch operand']
  %s0 = inlined_call_operand.vmem [shape: bf16[16,16], index: 0, kind: input, shape index: {}]
  %s1 = inlined_call_operand.vmem [shape: bf16[16,4], index: 1, kind: input, shape index: {}]
  %s2 = inlined_call_operand.vmem [shape: f32[4,32], index: 2, kind: input, shape index: {}]
  %s3 = inlined_call_operand.vmem [shape: f32[1,32], index: 3, kind: input, shape index: {}]
  %s4 = inlined_call_operand.hbm [shape: f32[32,32], index: 4, kind: input, shape index: {}]
  %s5 = inlined_call_operand.vmem [shape: f32[1,32], index: 5, kind: input, shape index: {}]
  %s6 = inlined_call_operand.hbm [shape: bf16[16,32], index: 6, kind: output, shape index: {}]
  %s7 = sld [smem:[#allocation0]]
  $region46: #{tpu_custom_call.1} parent=0
    _
  %s9 = ssub.s32 1, %s7
  %s10 = scalar_select 0, %s9, %s7
  $region1: #{tpu_custom_call.1} parent=0
    #allocation3 [shape = 'u8[16384]{0}', space=vmem, size = 0x4000, scoped, tag = 'input window, operand 4, single buffered']
    #allocation4 [shape = 's32[1]{0}', space=sflag, size = 0x4, scoped, tag = 'scoped memory for tpu_custom_call.1']
    #allocation5 [shape = 's32[1]{0}', space=sflag, size = 0x4, scoped, tag = 'scoped memory for tpu_custom_call.1']
    #allocation6 [shape = 'u8[4096]{0}', space=vmem, size = 0x1000, scoped, tag = 'output window, operand 0, single buffered']
    %11 = vsyncpa [#allocation4], 0
    %12 = vsyncpa [#allocation5], 0
    // Predicated region
    $region2: #{tpu_custom_call.1} parent=1 // pred_check
      _
    $region3: #{tpu_custom_call.1} parent=1 // pred_check_branch
      %14 = sbr.rel (0) target = $region5
    $region4: #{tpu_custom_call.1} parent=1 // pred_region
      _
    $region5: #{tpu_custom_call.1} parent=1 // pred_fallthru
      _
    // Predicated region
    $region6: #{tpu_custom_call.1} parent=1 // pred_check
      _
    $region7: #{tpu_custom_call.1} parent=1 // pred_check_branch
      %16 = sbr.rel (0) target = $region9
    $region8: #{tpu_custom_call.1} parent=1 // pred_region
      _
    $region9: #{tpu_custom_call.1} parent=1 // pred_fallthru
      _
    // Predicated region
    $region10: #{tpu_custom_call.1} parent=1 // pred_check
      _
    $region11: #{tpu_custom_call.1} parent=1 // pred_check_branch
      %18 = sbr.rel (0) target = $region13
    $region12: #{tpu_custom_call.1} parent=1 // pred_region
      _
    $region13: #{tpu_custom_call.1} parent=1 // pred_fallthru
      _
    // Predicated region
    $region14: #{tpu_custom_call.1} parent=1 // pred_check
      _
    $region15: #{tpu_custom_call.1} parent=1 // pred_check_branch
      %20 = sbr.rel (0) target = $region17
    $region16: #{tpu_custom_call.1} parent=1 // pred_region
      _
    $region17: #{tpu_custom_call.1} parent=1 // pred_fallthru
      _
    // Predicated region
    $region18: #{tpu_custom_call.1} parent=1 // pred_check
      _
    $region19: #{tpu_custom_call.1} parent=1 // pred_check_branch
      %22 = sbr.rel (0) target = $region21
    $region20: #{tpu_custom_call.1} parent=1 // pred_region
      %s24 = ssub.s32 512, 512
      %25 = vsyncadd [#allocation4], %s24
      %s26 = sshll.u32 [#allocation3], 4
      %s27 = int_to_ptr.vmem [resolvable:$true] %s26
      %32 = dma.hbm_to_vmem [thread:$0]  %s4, 512, %s27, [#allocation4], 128, 128, 8
    $region21: #{tpu_custom_call.1} parent=1 // pred_fallthru
      _
    // Predicated region
    $region22: #{tpu_custom_call.1} parent=1 // pred_check
      _
    $region23: #{tpu_custom_call.1} parent=1 // pred_check_branch
      %34 = sbr.rel (0) target = $region25
    $region24: #{tpu_custom_call.1} parent=1 // pred_region
      _
    $region25: #{tpu_custom_call.1} parent=1 // pred_fallthru
      _
    // Predicated region
    $region26: #{tpu_custom_call.1} parent=1 // pred_check
      _
    $region27: #{tpu_custom_call.1} parent=1 // pred_check_branch
      %36 = sbr.rel (0) target = $region29
    $region28: #{tpu_custom_call.1} parent=1 // pred_region
      %37 = dma.done [#allocation4], 512
    $region29: #{tpu_custom_call.1} parent=1 // pred_fallthru
      _
    %p39 = scmp.eq.s32.totalorder 0, 0
    // Predicated region
    $region30: #{tpu_custom_call.1} parent=1 // pred_check
      %p40 = pneg %p39
    $region31: #{tpu_custom_call.1} parent=1 // pred_check_branch
      %42 = sbr.rel (%p40) target = $region33
    $region32: #{tpu_custom_call.1} parent=1 // pred_region
      %vm43 = vcmask 31744
      %44 = vst.msk [vmem:[#allocation2] sm:$0xff] %vm43, 0.0
      %45 = vst.msk [vmem:[#allocation2 + $0x8] sm:$0xff] %vm43, 0.0
    $region33: #{tpu_custom_call.1} parent=1 // pred_fallthru
      _
    %v46 = vld [vmem:[#allocation2] sm:$0xff]
    %v47 = vld [vmem:[#allocation2 + $0x8] sm:$0xff]
    %v48 = vld [vmem:[%s0] sm:$0xf]
    %v49 = vld [vmem:[%s0 + $0x4] sm:$0xf]
    %v50 = vld [vmem:[%s1] sm:$0xf]
    %v51 = vld [vmem:[%s1 + $0x4] sm:$0xf]
    %v54 = vunpack.c.l.b16 %v48
    %v55 = vunpack.c.l.b16 %v49
    %v56 = vpack.c.b16 %v55, %v54
    %v59 = vunpack.c.l.b16 %v50
    %v60 = vunpack.c.l.b16 %v51
    %v61 = vpack.c.b16 %v60, %v59
    %vm63 = vcmask 130048
    %v65 = vsel %vm63, %v56, 0
    %67 = vmatprep.subr.bf16.mxu0 0
    %68 = vmatpush1.bf16.msra.mxu0 %v61
    %69 = vmatprep.subr.bf16.mxu0 0
    %70 = vmatpush1.bf16.msra.mxu0 0
    %71 = vmatprep.subr.bf16.mxu0 0
    %72 = vmatpush1.bf16.msra.mxu0 0
    %73 = vmatprep.subr.bf16.mxu0 0
    %74 = vmatpush1.bf16.msra.mxu0 0
    %75 = vmatprep.subr.bf16.mxu0 0
    %76 = vmatpush1.bf16.msra.mxu0 0
    %77 = vmatprep.subr.bf16.mxu0 0
    %78 = vmatpush1.bf16.msra.mxu0 0
    %79 = vmatprep.subr.bf16.mxu0 0
    %80 = vmatpush1.bf16.msra.mxu0 0
    %81 = vmatprep.subr.bf16.mxu0 0
    %82 = vmatpush1.bf16.msra.mxu0 0
    %83 = vmatprep.subr.bf16.mxu0 0
    %84 = vmatpush1.bf16.msra.mxu0 0
    %85 = vmatprep.subr.bf16.mxu0 0
    %86 = vmatpush1.bf16.msra.mxu0 0
    %87 = vmatprep.subr.bf16.mxu0 0
    %88 = vmatpush1.bf16.msra.mxu0 0
    %89 = vmatprep.subr.bf16.mxu0 0
    %90 = vmatpush1.bf16.msra.mxu0 0
    %91 = vmatprep.subr.bf16.mxu0 0
    %92 = vmatpush1.bf16.msra.mxu0 0
    %93 = vmatprep.subr.bf16.mxu0 0
    %94 = vmatpush1.bf16.msra.mxu0 0
    %95 = vmatprep.subr.bf16.mxu0 0
    %96 = vmatpush1.bf16.msra.mxu0 0
    %97 = vmatprep.subr.bf16.mxu0 0
    %98 = vmatpush1.bf16.msra.mxu0 0
    %99 = vmatprep.mubr.bf16.mxu0 0
    %100 = vmatmul.mubr.bf16.gmra.mrb[0].mxu0 %v65
    %v101 = vpop.f32.mrb[0].mxu0
    %v102 = vadd.f32 0.0, %v101
    %v103 = vpop.f32.mrb[0].mxu0
    %v104 = vpop.f32.mrb[0].mxu0
    %v105 = vadd.f32 0.0, %v104
    %v106 = vpop.f32.mrb[0].mxu0
    %107 = vdwg.mxu0
    %v108 = vadd.f32 %v46, %v102
    %v109 = vadd.f32 %v47, %v105
    %vm110 = vcmask 31744
    %111 = vst.msk [vmem:[#allocation2] sm:$0xff] %vm110, %v108
    %112 = vst.msk [vmem:[#allocation2 + $0x8] sm:$0xff] %vm110, %v109
    // Predicated region
    $region34: #{tpu_custom_call.1} parent=1 // pred_check
      %p113 = pneg %p39
    $region35: #{tpu_custom_call.1} parent=1 // pred_check_branch
      %115 = sbr.rel (%p113) target = $region37
    $region36: #{tpu_custom_call.1} parent=1 // pred_region
      %v116 = vld [vmem:[#allocation2] sm:$0xff]
      %v117 = vld [vmem:[#allocation2 + $0x8] sm:$0xff]
      %v118 = vld [vmem:[%s2] sm:$0xf]
      %v119 = vld [vmem:[%s3] sm:$0x1]
      %v121 = vlaneseq
      %v122 = vshrl.u32 %v121, 7
      %v123 = vsub.s32 0, %v122
      %v124 = vrot.slane %v119, %v123
      %v127 = vsel %vm110, %v116, 0
      %v130 = vsel %vm110, %v117, 0
      %vm132 = vcmask 1043456
      %v134 = vsel %vm132, %v118, 0
      %136 = vmatprep.subr.mxu0 0.0
      %137 = vmatpush1.msra.mxu0 %v134
      %138 = vmatprep.subr.mxu0 0.0
      %139 = vmatpush1.msra.mxu0 0.0
      %140 = vmatprep.subr.mxu0 0.0
      %141 = vmatpush1.msra.mxu0 0.0
      %142 = vmatprep.subr.mxu0 0.0
      %143 = vmatpush1.msra.mxu0 0.0
      %144 = vmatprep.subr.mxu0 0.0
      %145 = vmatpush1.msra.mxu0 0.0
      %146 = vmatprep.subr.mxu0 0.0
      %147 = vmatpush1.msra.mxu0 0.0
      %148 = vmatprep.subr.mxu0 0.0
      %149 = vmatpush1.msra.mxu0 0.0
      %150 = vmatprep.subr.mxu0 0.0
      %151 = vmatpush1.msra.mxu0 0.0
      %152 = vmatprep.subr.mxu0 0.0
      %153 = vmatpush1.msra.mxu0 0.0
      %154 = vmatprep.subr.mxu0 0.0
      %155 = vmatpush1.msra.mxu0 0.0
      %156 = vmatprep.subr.mxu0 0.0
      %157 = vmatpush1.msra.mxu0 0.0
      %158 = vmatprep.subr.mxu0 0.0
      %159 = vmatpush1.msra.mxu0 0.0
      %160 = vmatprep.subr.mxu0 0.0
      %161 = vmatpush1.msra.mxu0 0.0
      %162 = vmatprep.subr.mxu0 0.0
      %163 = vmatpush1.msra.mxu0 0.0
      %164 = vmatprep.subr.mxu0 0.0
      %165 = vmatpush1.msra.mxu0 0.0
      %166 = vmatprep.subr.mxu0 0.0
      %167 = vmatpush1.msra.mxu0 0.0
      %168 = vmatprep.subr.mxu0 0.0
      %169 = vmatpush1.msra.mxu0 0.0
      %170 = vmatprep.subr.mxu0 0.0
      %171 = vmatpush1.msra.mxu0 0.0
      %172 = vmatprep.subr.mxu0 0.0
      %173 = vmatpush1.msra.mxu0 0.0
      %174 = vmatprep.subr.mxu0 0.0
      %175 = vmatpush1.msra.mxu0 0.0
      %176 = vmatprep.subr.mxu0 0.0
      %177 = vmatpush1.msra.mxu0 0.0
      %178 = vmatprep.subr.mxu0 0.0
      %179 = vmatpush1.msra.mxu0 0.0
      %180 = vmatprep.subr.mxu0 0.0
      %181 = vmatpush1.msra.mxu0 0.0
      %182 = vmatprep.subr.mxu0 0.0
      %183 = vmatpush1.msra.mxu0 0.0
      %184 = vmatprep.subr.mxu0 0.0
      %185 = vmatpush1.msra.mxu0 0.0
      %186 = vmatprep.subr.mxu0 0.0
      %187 = vmatpush1.msra.mxu0 0.0
      %188 = vmatprep.subr.mxu0 0.0
      %189 = vmatpush1.msra.mxu0 0.0
      %190 = vmatprep.subr.mxu0 0.0
      %191 = vmatpush1.msra.mxu0 0.0
      %192 = vmatprep.subr.mxu0 0.0
      %193 = vmatpush1.msra.mxu0 0.0
      %194 = vmatprep.subr.mxu0 0.0
      %195 = vmatpush1.msra.mxu0 0.0
      %196 = vmatprep.subr.mxu0 0.0
      %197 = vmatpush1.msra.mxu0 0.0
      %198 = vmatprep.subr.mxu0 0.0
      %199 = vmatpush1.msra.mxu0 0.0
      %200 = vmatprep.mubr.f32.mxu0 0.0
      %201 = vmatmul.mubr.f32.gmra.mrb[0].mxu0 %v127
      %v202 = vpop.f32.mrb[0].mxu0
      %v203 = vadd.f32 %v124, %v202
      %v204 = vpop.f32.mrb[0].mxu0
      %205 = vmatprep.mubr.f32.mxu0 0.0
      %206 = vmatmul.mubr.f32.gmra.mrb[0].mxu0 %v130
      %v207 = vpop.f32.mrb[0].mxu0
      %v208 = vadd.f32 %v124, %v207
      %v209 = vpop.f32.mrb[0].mxu0
      %210 = vdwg.mxu0
      %v211 = vmax.f32 %v203, 0.0
      %v212 = vmax.f32 %v208, 0.0
      %v213 = vld [vmem:[#allocation3] sm:$0xff]
      %v214 = vld [vmem:[#allocation3 + $0x8] sm:$0xff]
      %v215 = vld [vmem:[#allocation3 + $0x10] sm:$0xff]
      %v216 = vld [vmem:[#allocation3 + $0x18] sm:$0xff]
      %v217 = vld [vmem:[%s5] sm:$0x1]
      %v219 = vlaneseq
      %v220 = vshrl.u32 %v219, 7
      %v221 = vsub.s32 0, %v220
      %v222 = vrot.slane %v217, %v221
      %vm224 = vcmask 261120
      %v226 = vsel %vm224, %v211, 0
      %v229 = vsel %vm224, %v212, 0
      %231 = vmatprep.subr.mxu0 0.0
      %232 = vmatpush1.msra.mxu0 %v213
      %233 = vmatprep.subr.mxu0 0.0
      %234 = vmatpush1.msra.mxu0 %v214
      %235 = vmatprep.subr.mxu0 0.0
      %236 = vmatpush1.msra.mxu0 %v215
      %237 = vmatprep.subr.mxu0 0.0
      %238 = vmatpush1.msra.mxu0 %v216
      %239 = vmatprep.subr.mxu0 0.0
      %240 = vmatpush1.msra.mxu0 0.0
      %241 = vmatprep.subr.mxu0 0.0
      %242 = vmatpush1.msra.mxu0 0.0
      %243 = vmatprep.subr.mxu0 0.0
      %244 = vmatpush1.msra.mxu0 0.0
      %245 = vmatprep.subr.mxu0 0.0
      %246 = vmatpush1.msra.mxu0 0.0
      %247 = vmatprep.subr.mxu0 0.0
      %248 = vmatpush1.msra.mxu0 0.0
      %249 = vmatprep.subr.mxu0 0.0
      %250 = vmatpush1.msra.mxu0 0.0
      %251 = vmatprep.subr.mxu0 0.0
      %252 = vmatpush1.msra.mxu0 0.0
      %253 = vmatprep.subr.mxu0 0.0
      %254 = vmatpush1.msra.mxu0 0.0
      %255 = vmatprep.subr.mxu0 0.0
      %256 = vmatpush1.msra.mxu0 0.0
      %257 = vmatprep.subr.mxu0 0.0
      %258 = vmatpush1.msra.mxu0 0.0
      %259 = vmatprep.subr.mxu0 0.0
      %260 = vmatpush1.msra.mxu0 0.0
      %261 = vmatprep.subr.mxu0 0.0
      %262 = vmatpush1.msra.mxu0 0.0
      %263 = vmatprep.subr.mxu0 0.0
      %264 = vmatpush1.msra.mxu0 0.0
      %265 = vmatprep.subr.mxu0 0.0
      %266 = vmatpush1.msra.mxu0 0.0
      %267 = vmatprep.subr.mxu0 0.0
      %268 = vmatpush1.msra.mxu0 0.0
      %269 = vmatprep.subr.mxu0 0.0
      %270 = vmatpush1.msra.mxu0 0.0
      %271 = vmatprep.subr.mxu0 0.0
      %272 = vmatpush1.msra.mxu0 0.0
      %273 = vmatprep.subr.mxu0 0.0
      %274 = vmatpush1.msra.mxu0 0.0
      %275 = vmatprep.subr.mxu0 0.0
      %276 = vmatpush1.msra.mxu0 0.0
      %277 = vmatprep.subr.mxu0 0.0
      %278 = vmatpush1.msra.mxu0 0.0
      %279 = vmatprep.subr.mxu0 0.0
      %280 = vmatpush1.msra.mxu0 0.0
      %281 = vmatprep.subr.mxu0 0.0
      %282 = vmatpush1.msra.mxu0 0.0
      %283 = vmatprep.subr.mxu0 0.0
      %284 = vmatpush1.msra.mxu0 0.0
      %285 = vmatprep.subr.mxu0 0.0
      %286 = vmatpush1.msra.mxu0 0.0
      %287 = vmatprep.subr.mxu0 0.0
      %288 = vmatpush1.msra.mxu0 0.0
      %289 = vmatprep.subr.mxu0 0.0
      %290 = vmatpush1.msra.mxu0 0.0
      %291 = vmatprep.subr.mxu0 0.0
      %292 = vmatpush1.msra.mxu0 0.0
      %293 = vmatprep.subr.mxu0 0.0
      %294 = vmatpush1.msra.mxu0 0.0
      %295 = vmatprep.mubr.f32.mxu0 0.0
      %296 = vmatmul.mubr.f32.gmra.mrb[0].mxu0 %v226
      %v297 = vpop.f32.mrb[0].mxu0
      %v298 = vadd.f32 %v222, %v297
      %v299 = vpop.f32.mrb[0].mxu0
      %300 = vmatprep.mubr.f32.mxu0 0.0
      %301 = vmatmul.mubr.f32.gmra.mrb[0].mxu0 %v229
      %v302 = vpop.f32.mrb[0].mxu0
      %v303 = vadd.f32 %v222, %v302
      %v304 = vpop.f32.mrb[0].mxu0
      %305 = vdwg.mxu0
      %v306 = vmax.f32 %v298, 0.0
      %v307 = vmax.f32 %v303, 0.0
      %v308 = vpack.c.bf16 %v307, %v306
      %v310 = vunpack.c.l.b16 %v308
      %v311 = vunpack.c.h.b16 %v308
      %v312 = vpack.c.b16 %v310, %v310
      %v313 = vpack.c.b16 %v311, %v311
      %vm316 = vcmask 257024
      %317 = vst.msk [vmem:[#allocation6] sm:$0xf] %vm316, %v312
      %318 = vst.msk [vmem:[#allocation6 + $0x4] sm:$0xf] %vm316, %v313
    $region37: #{tpu_custom_call.1} parent=1 // pred_fallthru
      _
    // Predicated region
    $region38: #{tpu_custom_call.1} parent=1 // pred_check
      _
    $region39: #{tpu_custom_call.1} parent=1 // pred_check_branch
      %320 = sbr.rel (0) target = $region41
    $region40: #{tpu_custom_call.1} parent=1 // pred_region
      %s322 = ssub.s32 128, 128
      %323 = vsyncadd [#allocation5], %s322
      %s324 = sshll.u32 [#allocation6], 4
      %s325 = int_to_ptr.vmem [resolvable:$true] %s324
      %330 = dma.vmem_to_hbm [thread:$0]  %s325, 128, %s6, [#allocation5], 64, 64, 4
    $region41: #{tpu_custom_call.1} parent=1 // pred_fallthru
      _
    // Predicated region
    $region42: #{tpu_custom_call.1} parent=1 // pred_check
      _
    $region43: #{tpu_custom_call.1} parent=1 // pred_check_branch
      %332 = sbr.rel (0) target = $region45
    $region44: #{tpu_custom_call.1} parent=1 // pred_region
      %333 = dma.done [#allocation5], 128
    $region45: #{tpu_custom_call.1} parent=1 // pred_fallthru
      _
    %334 = vsyncpa [#allocation4], 1
    %335 = vsyncpa [#allocation5], 1

</llo_original>
